<compile_context>
chip_gen: v7x
topology: tpu7x:2x2x1
jax: 0.10.0
libtpu: 0.0.40
codegen_flags: <defaults>
</compile_context>

<pallas_src>
import numpy as np
import jax
import jax.numpy as jnp
from jax.experimental import pallas as pl
from jax.experimental.pallas import tpu as pltpu

NEG_SLOPE = 0.01          # F.leaky_relu default
H1, H2 = 256, 128         # hidden widths from the PyTorch module
LANE = 128
SUBLANE = 8
TILE_B_MAX = 256          # batch tile (review: 256-512)


def _round_up(x, m):
    return (x + m - 1) // m * m


def _leaky_relu(x):
    return jnp.where(x > 0, x, NEG_SLOPE * x)


def actor_forward_kernel(x_ref, w1_ref, b1_ref, w2_ref, b2_ref, w3_ref, b3_ref,
                         out_ref):
    """Fused 3-layer MLP on one batch tile. Weights arrive as bf16 (resident
    across grid steps); dots accumulate in f32 on the MXU; elementwise math
    (bias add, leaky_relu, tanh) stays in f32."""
    x = x_ref[...].astype(jnp.bfloat16)

    h1 = jnp.dot(x, w1_ref[...], preferred_element_type=jnp.float32) + b1_ref[...]
    h1 = _leaky_relu(h1)

    h2 = jnp.dot(h1.astype(jnp.bfloat16), w2_ref[...],
                 preferred_element_type=jnp.float32) + b2_ref[...]
    h2 = _leaky_relu(h2)

    o = jnp.dot(h2.astype(jnp.bfloat16), w3_ref[...],
                preferred_element_type=jnp.float32) + b3_ref[...]
    out_ref[...] = jnp.tanh(o)


@jax.jit
def actor_forward(state, params):
    """state: (B, state_size) f32. params: dict of W1,b1,W2,b2,W3,b3 (f32)."""
    B, state_size = state.shape
    action_size = params["W3"].shape[1]

    k_pad = _round_up(state_size, LANE)        # pad contraction dim to 128
    n_pad = _round_up(action_size, LANE)       # pad output dim to 128 (lane-dense stores)
    tile_b = min(TILE_B_MAX, _round_up(B, SUBLANE))
    b_pad = _round_up(B, tile_b)

    # Zero-pad inputs / weights so every block is (8,128)-friendly.
    x = jnp.pad(state, ((0, b_pad - B), (0, k_pad - state_size)))
    w1 = jnp.pad(params["W1"], ((0, k_pad - state_size), (0, 0))).astype(jnp.bfloat16)
    w2 = params["W2"].astype(jnp.bfloat16)
    w3 = jnp.pad(params["W3"], ((0, 0), (0, n_pad - action_size))).astype(jnp.bfloat16)
    b1 = params["b1"]
    b2 = params["b2"]
    b3 = jnp.pad(params["b3"], ((0, 0), (0, n_pad - action_size)))

    grid = (b_pad // tile_b,)
    const = lambda i: (0, 0)                   # weights/biases: same block every step

    out = pl.pallas_call(
        actor_forward_kernel,
        out_shape=jax.ShapeDtypeStruct((b_pad, n_pad), jnp.float32),
        grid=grid,
        in_specs=[
            pl.BlockSpec((tile_b, k_pad), lambda i: (i, 0)),   # x tile (pipelined)
            pl.BlockSpec((k_pad, H1), const),                  # W1 (resident)
            pl.BlockSpec((1, H1), const),                      # b1
            pl.BlockSpec((H1, H2), const),                     # W2
            pl.BlockSpec((1, H2), const),                      # b2
            pl.BlockSpec((H2, n_pad), const),                  # W3
            pl.BlockSpec((1, n_pad), const),                   # b3
        ],
        out_specs=pl.BlockSpec((tile_b, n_pad), lambda i: (i, 0)),
        compiler_params=pltpu.CompilerParams(
            dimension_semantics=("parallel",)),                # 2-TC sharding on v7x
    )(x, w1, b1, w2, b2, w3, b3)

    return out[:B, :action_size]


def init_actor_params(key, state_size, action_size):
    """Deterministic init mirroring ActorNetwork.reset_parameters():
       layer1/layer2 weights ~ U(-1/sqrt(fan_in_torch), +1/sqrt(fan_in_torch))
       (hidden_init uses weight.size()[0] == out_features), out-layer weights
       ~ U(-3e-3, 3e-3); biases keep PyTorch's default Linear init."""
    k = jax.random.split(key, 6)

    def uni(kk, shape, lim):
        return jax.random.uniform(kk, shape, jnp.float32, -lim, lim)

    lim1 = 1.0 / np.sqrt(256.0)
    lim2 = 1.0 / np.sqrt(128.0)

    return {
        # stored as (in, out) — transpose of nn.Linear's (out, in)
        "W1": uni(k[0], (state_size, 256), lim1),
        "b1": uni(k[1], (1, 256), 1.0 / np.sqrt(state_size)),
        "W2": uni(k[2], (256, 128), lim2),
        "b2": uni(k[3], (1, 128), 1.0 / np.sqrt(256.0)),
        "W3": uni(k[4], (128, action_size), 3e-3),
        "b3": uni(k[5], (1, action_size), 1.0 / np.sqrt(128.0)),
    }


def actor_forward_ref(state, params):
    """Pure-JAX f32 reference for correctness checking."""
    h1 = _leaky_relu(state @ params["W1"] + params["b1"])
    h2 = _leaky_relu(h1 @ params["W2"] + params["b2"])
    return jnp.tanh(h2 @ params["W3"] + params["b3"])


if __name__ == "__main__":
    key = jax.random.PRNGKey(0)
    k_state, k_params, k_state2 = jax.random.split(key, 3)

    state_size = 32
    action_size = 4
    params = init_actor_params(k_params, state_size, action_size)

    # Small batch: single grid step.
    state = jax.random.normal(k_state, (8, state_size), jnp.float32)
    out = jax.block_until_ready(actor_forward(state, params))
    ref = actor_forward_ref(state, params)
    np.testing.assert_allclose(np.asarray(out), np.asarray(ref),
                               rtol=2e-2, atol=2e-2)   # bf16 MXU operands
    assert out.shape == (8, action_size)

    # Larger ragged batch: exercises multi-step grid + batch padding path.
    state2 = jax.random.normal(k_state2, (300, state_size), jnp.float32)
    out2 = jax.block_until_ready(actor_forward(state2, params))
    ref2 = actor_forward_ref(state2, params)
    np.testing.assert_allclose(np.asarray(out2), np.asarray(ref2),
                               rtol=2e-2, atol=2e-2)
    assert out2.shape == (300, action_size)

    print("KERNEL_OK")
</pallas_src>

<mosaic_0001>
module attributes {stable_mosaic.version = 11 : i64} {
  func.func @actor_forward_kernel(%arg0: i32, %arg1: memref<8x128xf32, #tpu.memory_space<vmem>>, %arg2: memref<128x256xbf16, #tpu.memory_space<vmem>>, %arg3: memref<1x256xf32, #tpu.memory_space<vmem>>, %arg4: memref<256x128xbf16, #tpu.memory_space<vmem>>, %arg5: memref<1x128xf32, #tpu.memory_space<vmem>>, %arg6: memref<128x128xbf16, #tpu.memory_space<vmem>>, %arg7: memref<1x128xf32, #tpu.memory_space<vmem>>, %arg8: memref<8x128xf32, #tpu.memory_space<vmem>>) attributes {dimension_semantics = [#tpu.dimension_semantics<parallel>], iteration_bounds = array<i64: 1>, scalar_prefetch = 0 : i64, scratch_operands = 0 : i64, tpu.core_type = #tpu.core_type<tc>, window_params = [{transform_indices = @transform_0, window_bounds = array<i64: 8, 128>}, {pipeline_mode = #tpu.pipeline_mode<synchronous>, transform_indices = @transform_1, window_bounds = array<i64: 128, 256>}, {pipeline_mode = #tpu.pipeline_mode<synchronous>, transform_indices = @transform_2, window_bounds = array<i64: 1, 256>}, {pipeline_mode = #tpu.pipeline_mode<synchronous>, transform_indices = @transform_3, window_bounds = array<i64: 256, 128>}, {pipeline_mode = #tpu.pipeline_mode<synchronous>, transform_indices = @transform_4, window_bounds = array<i64: 1, 128>}, {pipeline_mode = #tpu.pipeline_mode<synchronous>, transform_indices = @transform_5, window_bounds = array<i64: 128, 128>}, {pipeline_mode = #tpu.pipeline_mode<synchronous>, transform_indices = @transform_6, window_bounds = array<i64: 1, 128>}, {transform_indices = @transform_7, window_bounds = array<i64: 8, 128>}]} {
    %c0 = arith.constant 0 : index
    %c0_0 = arith.constant 0 : index
    %0 = vector.load %arg1[%c0, %c0_0] : memref<8x128xf32, #tpu.memory_space<vmem>>, vector<8x128xf32>
    %1 = arith.truncf %0 : vector<8x128xf32> to vector<8x128xbf16>
    %c0_1 = arith.constant 0 : index
    %c0_2 = arith.constant 0 : index
    %2 = vector.load %arg2[%c0_1, %c0_2] : memref<128x256xbf16, #tpu.memory_space<vmem>>, vector<128x256xbf16>
    %cst = arith.constant dense<0.000000e+00> : vector<8x256xf32>
    %3 = tpu.matmul %1, %2, %cst {dimension_numbers = #tpu.dot_dimension_numbers<[1], [0], [0], [1], [0, 0, 1, 1], [], []>} : vector<8x128xbf16>, vector<128x256xbf16>, vector<8x256xf32> -> vector<8x256xf32>
    %c0_3 = arith.constant 0 : index
    %c0_4 = arith.constant 0 : index
    %4 = vector.load %arg3[%c0_3, %c0_4] : memref<1x256xf32, #tpu.memory_space<vmem>>, vector<1x256xf32>
    %5 = vector.broadcast %4 : vector<1x256xf32> to vector<8x256xf32>
    %6 = arith.addf %3, %5 : vector<8x256xf32>
    %cst_5 = arith.constant 0.000000e+00 : f32
    %7 = vector.broadcast %cst_5 : f32 to vector<8x256xf32>
    %8 = arith.cmpf ogt, %6, %7 : vector<8x256xf32>
    %cst_6 = arith.constant 0.00999999977 : f32
    %9 = vector.broadcast %cst_6 : f32 to vector<8x256xf32>
    %10 = arith.mulf %9, %6 : vector<8x256xf32>
    %11 = arith.select %8, %6, %10 : vector<8x256xi1>, vector<8x256xf32>
    %12 = arith.truncf %11 : vector<8x256xf32> to vector<8x256xbf16>
    %c0_7 = arith.constant 0 : index
    %c0_8 = arith.constant 0 : index
    %13 = vector.load %arg4[%c0_7, %c0_8] : memref<256x128xbf16, #tpu.memory_space<vmem>>, vector<256x128xbf16>
    %cst_9 = arith.constant dense<0.000000e+00> : vector<8x128xf32>
    %14 = tpu.matmul %12, %13, %cst_9 {dimension_numbers = #tpu.dot_dimension_numbers<[1], [0], [0], [1], [0, 0, 1, 1], [], []>} : vector<8x256xbf16>, vector<256x128xbf16>, vector<8x128xf32> -> vector<8x128xf32>
    %c0_10 = arith.constant 0 : index
    %c0_11 = arith.constant 0 : index
    %15 = vector.load %arg5[%c0_10, %c0_11] : memref<1x128xf32, #tpu.memory_space<vmem>>, vector<1x128xf32>
    %16 = vector.broadcast %15 : vector<1x128xf32> to vector<8x128xf32>
    %17 = arith.addf %14, %16 : vector<8x128xf32>
    %cst_12 = arith.constant 0.000000e+00 : f32
    %18 = vector.broadcast %cst_12 : f32 to vector<8x128xf32>
    %19 = arith.cmpf ogt, %17, %18 : vector<8x128xf32>
    %cst_13 = arith.constant 0.00999999977 : f32
    %20 = vector.broadcast %cst_13 : f32 to vector<8x128xf32>
    %21 = arith.mulf %20, %17 : vector<8x128xf32>
    %22 = arith.select %19, %17, %21 : vector<8x128xi1>, vector<8x128xf32>
    %23 = arith.truncf %22 : vector<8x128xf32> to vector<8x128xbf16>
    %c0_14 = arith.constant 0 : index
    %c0_15 = arith.constant 0 : index
    %24 = vector.load %arg6[%c0_14, %c0_15] : memref<128x128xbf16, #tpu.memory_space<vmem>>, vector<128x128xbf16>
    %cst_16 = arith.constant dense<0.000000e+00> : vector<8x128xf32>
    %25 = tpu.matmul %23, %24, %cst_16 {dimension_numbers = #tpu.dot_dimension_numbers<[1], [0], [0], [1], [0, 0, 1, 1], [], []>} : vector<8x128xbf16>, vector<128x128xbf16>, vector<8x128xf32> -> vector<8x128xf32>
    %c0_17 = arith.constant 0 : index
    %c0_18 = arith.constant 0 : index
    %26 = vector.load %arg7[%c0_17, %c0_18] : memref<1x128xf32, #tpu.memory_space<vmem>>, vector<1x128xf32>
    %27 = vector.broadcast %26 : vector<1x128xf32> to vector<8x128xf32>
    %28 = arith.addf %25, %27 : vector<8x128xf32>
    %29 = math.tanh %28 : vector<8x128xf32>
    %c0_19 = arith.constant 0 : index
    %c0_20 = arith.constant 0 : index
    %30 = vector.load %arg8[%c0_19, %c0_20] : memref<8x128xf32, #tpu.memory_space<vmem>>, vector<8x128xf32>
    tpu.vector_store %arg8[%c0_19, %c0_20], %29 {strides = array<i32>} : memref<8x128xf32, #tpu.memory_space<vmem>>, vector<8x128xf32>,
    return
  }
  func.func @transform_0(%arg0: i32) -> (i32, i32) {
    %c0_i32 = arith.constant 0 : i32
    %c0_i32_0 = arith.constant 0 : i32
    return %arg0, %c0_i32 : i32, i32
  }
  func.func @transform_1(%arg0: i32) -> (i32, i32) {
    %c0_i32 = arith.constant 0 : i32
    %c0_i32_0 = arith.constant 0 : i32
    %c0_i32_1 = arith.constant 0 : i32
    return %c0_i32, %c0_i32_0 : i32, i32
  }
  func.func @transform_2(%arg0: i32) -> (i32, i32) {
    %c0_i32 = arith.constant 0 : i32
    %c0_i32_0 = arith.constant 0 : i32
    %c0_i32_1 = arith.constant 0 : i32
    return %c0_i32, %c0_i32_0 : i32, i32
  }
  func.func @transform_3(%arg0: i32) -> (i32, i32) {
    %c0_i32 = arith.constant 0 : i32
    %c0_i32_0 = arith.constant 0 : i32
    %c0_i32_1 = arith.constant 0 : i32
    return %c0_i32, %c0_i32_0 : i32, i32
  }
  func.func @transform_4(%arg0: i32) -> (i32, i32) {
    %c0_i32 = arith.constant 0 : i32
    %c0_i32_0 = arith.constant 0 : i32
    %c0_i32_1 = arith.constant 0 : i32
    return %c0_i32, %c0_i32_0 : i32, i32
  }
  func.func @transform_5(%arg0: i32) -> (i32, i32) {
    %c0_i32 = arith.constant 0 : i32
    %c0_i32_0 = arith.constant 0 : i32
    %c0_i32_1 = arith.constant 0 : i32
    return %c0_i32, %c0_i32_0 : i32, i32
  }
  func.func @transform_6(%arg0: i32) -> (i32, i32) {
    %c0_i32 = arith.constant 0 : i32
    %c0_i32_0 = arith.constant 0 : i32
    %c0_i32_1 = arith.constant 0 : i32
    return %c0_i32, %c0_i32_0 : i32, i32
  }
  func.func @transform_7(%arg0: i32) -> (i32, i32) {
    %c0_i32 = arith.constant 0 : i32
    %c0_i32_0 = arith.constant 0 : i32
    return %arg0, %c0_i32 : i32, i32
  }
}

</mosaic_0001>

<llo_original>
// kernel: actor_forward.1
$region0: #{actor_forward.1}
  #allocation0 [shape = 'u32[]', space=smem, size = 0x4, offset = 0x4, fixed_abs, tag = 'smem constant byte address 0x4 - core index']
  #allocation1 [shape = 'u32[144,128]{1,0:T(1,128)}', space=vmem, size = 0x12000, scoped, tag = 'internal scratch']
  %s0 = inlined_call_operand.vmem [shape: f32[8,128], index: 0, kind: input, shape index: {}]
  %s1 = inlined_call_operand.vmem [shape: bf16[128,256], index: 1, kind: input, shape index: {}]
  %s2 = inlined_call_operand.vmem [shape: f32[1,256], index: 2, kind: input, shape index: {}]
  %s3 = inlined_call_operand.vmem [shape: bf16[256,128], index: 3, kind: input, shape index: {}]
  %s4 = inlined_call_operand.vmem [shape: f32[1,128], index: 4, kind: input, shape index: {}]
  %s5 = inlined_call_operand.vmem [shape: bf16[128,128], index: 5, kind: input, shape index: {}]
  %s6 = inlined_call_operand.vmem [shape: f32[1,128], index: 6, kind: input, shape index: {}]
  %s7 = inlined_call_operand.vmem [shape: f32[8,128], index: 7, kind: output, shape index: {}]
  %s8 = sld [smem:[#allocation0]]
  $region38: #{actor_forward.1} parent=0
    _
  %s10 = ssub.s32 1, %s8
  %s11 = scalar_select 0, %s10, %s8
  // Predicated region
  $region2: #{actor_forward.1} parent=0 // pred_check
    _
  $region3: #{actor_forward.1} parent=0 // pred_check_branch
    %13 = sbr.rel (0) target = $region5
  $region4: #{actor_forward.1} parent=0 // pred_region
    _
  $region5: #{actor_forward.1} parent=0 // pred_fallthru
    _
  // Predicated region
  $region6: #{actor_forward.1} parent=0 // pred_check
    _
  $region7: #{actor_forward.1} parent=0 // pred_check_branch
    %15 = sbr.rel (0) target = $region9
  $region8: #{actor_forward.1} parent=0 // pred_region
    _
  $region9: #{actor_forward.1} parent=0 // pred_fallthru
    _
  // Predicated region
  $region10: #{actor_forward.1} parent=0 // pred_check
    _
  $region11: #{actor_forward.1} parent=0 // pred_check_branch
    %17 = sbr.rel (0) target = $region13
  $region12: #{actor_forward.1} parent=0 // pred_region
    _
  $region13: #{actor_forward.1} parent=0 // pred_fallthru
    _
  // Predicated region
  $region14: #{actor_forward.1} parent=0 // pred_check
    _
  $region15: #{actor_forward.1} parent=0 // pred_check_branch
    %19 = sbr.rel (0) target = $region17
  $region16: #{actor_forward.1} parent=0 // pred_region
    _
  $region17: #{actor_forward.1} parent=0 // pred_fallthru
    _
  // Predicated region
  $region18: #{actor_forward.1} parent=0 // pred_check
    _
  $region19: #{actor_forward.1} parent=0 // pred_check_branch
    %21 = sbr.rel (0) target = $region21
  $region20: #{actor_forward.1} parent=0 // pred_region
    _
  $region21: #{actor_forward.1} parent=0 // pred_fallthru
    _
  // Predicated region
  $region22: #{actor_forward.1} parent=0 // pred_check
    _
  $region23: #{actor_forward.1} parent=0 // pred_check_branch
    %23 = sbr.rel (0) target = $region25
  $region24: #{actor_forward.1} parent=0 // pred_region
    _
  $region25: #{actor_forward.1} parent=0 // pred_fallthru
    _
  // Predicated region
  $region26: #{actor_forward.1} parent=0 // pred_check
    _
  $region27: #{actor_forward.1} parent=0 // pred_check_branch
    %25 = sbr.rel (0) target = $region29
  $region28: #{actor_forward.1} parent=0 // pred_region
    _
  $region29: #{actor_forward.1} parent=0 // pred_fallthru
    _
  %v27 = vld [vmem:[%s0] sm:$0xff]
  %v28 = vpack.c.bf16 %v27, %v27
  %v29 = vld [vmem:[%s1] sm:$0xff]
  %v30 = vld [vmem:[%s1 + $0x8] sm:$0xff]
  %v31 = vld [vmem:[%s1 + $0x10] sm:$0xff]
  %v32 = vld [vmem:[%s1 + $0x18] sm:$0xff]
  %v33 = vld [vmem:[%s1 + $0x20] sm:$0xff]
  %v34 = vld [vmem:[%s1 + $0x28] sm:$0xff]
  %v35 = vld [vmem:[%s1 + $0x30] sm:$0xff]
  %v36 = vld [vmem:[%s1 + $0x38] sm:$0xff]
  %v37 = vld [vmem:[%s1 + $0x40] sm:$0xff]
  %v38 = vld [vmem:[%s1 + $0x48] sm:$0xff]
  %v39 = vld [vmem:[%s1 + $0x50] sm:$0xff]
  %v40 = vld [vmem:[%s1 + $0x58] sm:$0xff]
  %v41 = vld [vmem:[%s1 + $0x60] sm:$0xff]
  %v42 = vld [vmem:[%s1 + $0x68] sm:$0xff]
  %v43 = vld [vmem:[%s1 + $0x70] sm:$0xff]
  %v44 = vld [vmem:[%s1 + $0x78] sm:$0xff]
  %v45 = vld [vmem:[%s2] sm:$0x3]
  %v47 = vlaneseq
  %v48 = vshrl.u32 %v47, 7
  %v49 = vsub.s32 0, %v48
  %v50 = vrot.slane %v45, %v49
  %v51 = vlaneseq
  %v52 = vshrl.u32 %v51, 7
  %v53 = vsub.s32 1, %v52
  %v54 = vrot.slane %v45, %v53
  %v73 = vunpack.c.l.b16 %v29
  %v74 = vunpack.c.h.b16 %v29
  %v75 = vunpack.c.l.b16 %v30
  %v76 = vunpack.c.h.b16 %v30
  %v77 = vunpack.c.l.b16 %v31
  %v78 = vunpack.c.h.b16 %v31
  %v79 = vunpack.c.l.b16 %v32
  %v80 = vunpack.c.h.b16 %v32
  %v81 = vunpack.c.l.b16 %v33
  %v82 = vunpack.c.h.b16 %v33
  %v83 = vunpack.c.l.b16 %v34
  %v84 = vunpack.c.h.b16 %v34
  %v85 = vunpack.c.l.b16 %v35
  %v86 = vunpack.c.h.b16 %v35
  %v87 = vunpack.c.l.b16 %v36
  %v88 = vunpack.c.h.b16 %v36
  %v89 = vunpack.c.l.b16 %v37
  %v90 = vunpack.c.h.b16 %v37
  %v91 = vunpack.c.l.b16 %v38
  %v92 = vunpack.c.h.b16 %v38
  %v93 = vunpack.c.l.b16 %v39
  %v94 = vunpack.c.h.b16 %v39
  %v95 = vunpack.c.l.b16 %v40
  %v96 = vunpack.c.h.b16 %v40
  %v97 = vunpack.c.l.b16 %v41
  %v98 = vunpack.c.h.b16 %v41
  %v99 = vunpack.c.l.b16 %v42
  %v100 = vunpack.c.h.b16 %v42
  %v101 = vunpack.c.l.b16 %v43
  %v102 = vunpack.c.h.b16 %v43
  %v103 = vunpack.c.l.b16 %v44
  %v104 = vunpack.c.h.b16 %v44
  %v105 = vpack.c.b16 %v75, %v73
  %v106 = vpack.c.b16 %v76, %v74
  %v107 = vpack.c.b16 %v79, %v77
  %v108 = vpack.c.b16 %v80, %v78
  %v109 = vpack.c.b16 %v83, %v81
  %v110 = vpack.c.b16 %v84, %v82
  %v111 = vpack.c.b16 %v87, %v85
  %v112 = vpack.c.b16 %v88, %v86
  %v113 = vpack.c.b16 %v91, %v89
  %v114 = vpack.c.b16 %v92, %v90
  %v115 = vpack.c.b16 %v95, %v93
  %v116 = vpack.c.b16 %v96, %v94
  %v117 = vpack.c.b16 %v99, %v97
  %v118 = vpack.c.b16 %v100, %v98
  %v119 = vpack.c.b16 %v103, %v101
  %v120 = vpack.c.b16 %v104, %v102
  %137 = vmatprep.subr.bf16.mxu0 %v106
  %138 = vmatpush1.bf16.msra.mxu0 %v105
  %139 = vmatprep.subr.bf16.mxu0 %v108
  %140 = vmatpush1.bf16.msra.mxu0 %v107
  %141 = vmatprep.subr.bf16.mxu0 %v110
  %142 = vmatpush1.bf16.msra.mxu0 %v109
  %143 = vmatprep.subr.bf16.mxu0 %v112
  %144 = vmatpush1.bf16.msra.mxu0 %v111
  %145 = vmatprep.subr.bf16.mxu0 %v114
  %146 = vmatpush1.bf16.msra.mxu0 %v113
  %147 = vmatprep.subr.bf16.mxu0 %v116
  %148 = vmatpush1.bf16.msra.mxu0 %v115
  %149 = vmatprep.subr.bf16.mxu0 %v118
  %150 = vmatpush1.bf16.msra.mxu0 %v117
  %151 = vmatprep.subr.bf16.mxu0 %v120
  %152 = vmatpush1.bf16.msra.mxu0 %v119
  %153 = vmatprep.subr.bf16.mxu0 0
  %154 = vmatpush1.bf16.msra.mxu0 0
  %155 = vmatprep.subr.bf16.mxu0 0
  %156 = vmatpush1.bf16.msra.mxu0 0
  %157 = vmatprep.subr.bf16.mxu0 0
  %158 = vmatpush1.bf16.msra.mxu0 0
  %159 = vmatprep.subr.bf16.mxu0 0
  %160 = vmatpush1.bf16.msra.mxu0 0
  %161 = vmatprep.subr.bf16.mxu0 0
  %162 = vmatpush1.bf16.msra.mxu0 0
  %163 = vmatprep.subr.bf16.mxu0 0
  %164 = vmatpush1.bf16.msra.mxu0 0
  %165 = vmatprep.subr.bf16.mxu0 0
  %166 = vmatpush1.bf16.msra.mxu0 0
  %167 = vmatprep.subr.bf16.mxu0 0
  %168 = vmatpush1.bf16.msra.mxu0 0
  %169 = vmatprep.mubr.bf16.mxu0 0
  %170 = vmatmul.mubr.bf16.gmra.mrb[0].mxu0 %v28
  %v171 = vpop.f32.mrb[0].mxu0
  %v172 = vadd.f32 %v50, %v171
  %v173 = vpop.f32.mrb[0].mxu0
  %v174 = vadd.f32 %v54, %v173
  %v175 = vpop.f32.mrb[0].mxu0
  %v176 = vpop.f32.mrb[0].mxu0
  %177 = vdwg.mxu0
  %vm178 = vcmp.gt.f32.partialorder %v172, 0.0
  %vm179 = vcmp.gt.f32.partialorder %v174, 0.0
  %v180 = vmul.f32 %v172, 0.01
  %v181 = vmul.f32 %v174, 0.01
  %v182 = vsel %vm178, %v172, %v180
  %v183 = vsel %vm179, %v174, %v181
  %v184 = vpack.c.bf16 %v182, %v182
  %v185 = vpack.c.bf16 %v183, %v183
  %v186 = vld [vmem:[%s3] sm:$0xf]
  %v187 = vld [vmem:[%s3 + $0x4] sm:$0xf]
  %v188 = vld [vmem:[%s3 + $0x8] sm:$0xf]
  %v189 = vld [vmem:[%s3 + $0xc] sm:$0xf]
  %v190 = vld [vmem:[%s3 + $0x10] sm:$0xf]
  %v191 = vld [vmem:[%s3 + $0x14] sm:$0xf]
  %v192 = vld [vmem:[%s3 + $0x18] sm:$0xf]
  %v193 = vld [vmem:[%s3 + $0x1c] sm:$0xf]
  %v194 = vld [vmem:[%s3 + $0x20] sm:$0xf]
  %v195 = vld [vmem:[%s3 + $0x24] sm:$0xf]
  %v196 = vld [vmem:[%s3 + $0x28] sm:$0xf]
  %v197 = vld [vmem:[%s3 + $0x2c] sm:$0xf]
  %v198 = vld [vmem:[%s3 + $0x30] sm:$0xf]
  %v199 = vld [vmem:[%s3 + $0x34] sm:$0xf]
  %v200 = vld [vmem:[%s3 + $0x38] sm:$0xf]
  %v201 = vld [vmem:[%s3 + $0x3c] sm:$0xf]
  %v202 = vld [vmem:[%s3 + $0x40] sm:$0xf]
  %v203 = vld [vmem:[%s3 + $0x44] sm:$0xf]
  %v204 = vld [vmem:[%s3 + $0x48] sm:$0xf]
  %v205 = vld [vmem:[%s3 + $0x4c] sm:$0xf]
  %v206 = vld [vmem:[%s3 + $0x50] sm:$0xf]
  %v207 = vld [vmem:[%s3 + $0x54] sm:$0xf]
  %v208 = vld [vmem:[%s3 + $0x58] sm:$0xf]
  %v209 = vld [vmem:[%s3 + $0x5c] sm:$0xf]
  %v210 = vld [vmem:[%s3 + $0x60] sm:$0xf]
  %v211 = vld [vmem:[%s3 + $0x64] sm:$0xf]
  %v212 = vld [vmem:[%s3 + $0x68] sm:$0xf]
  %v213 = vld [vmem:[%s3 + $0x6c] sm:$0xf]
  %v214 = vld [vmem:[%s3 + $0x70] sm:$0xf]
  %v215 = vld [vmem:[%s3 + $0x74] sm:$0xf]
  %v216 = vld [vmem:[%s3 + $0x78] sm:$0xf]
  %v217 = vld [vmem:[%s3 + $0x7c] sm:$0xf]
  %v218 = vld [vmem:[%s4] sm:$0x1]
  %v220 = vlaneseq
  %v221 = vshrl.u32 %v220, 7
  %v222 = vsub.s32 0, %v221
  %v223 = vrot.slane %v218, %v222
  %v257 = vunpack.c.l.b16 %v186
  %v258 = vunpack.c.l.b16 %v187
  %v259 = vunpack.c.l.b16 %v188
  %v260 = vunpack.c.l.b16 %v189
  %v261 = vunpack.c.l.b16 %v190
  %v262 = vunpack.c.l.b16 %v191
  %v263 = vunpack.c.l.b16 %v192
  %v264 = vunpack.c.l.b16 %v193
  %v265 = vunpack.c.l.b16 %v194
  %v266 = vunpack.c.l.b16 %v195
  %v267 = vunpack.c.l.b16 %v196
  %v268 = vunpack.c.l.b16 %v197
  %v269 = vunpack.c.l.b16 %v198
  %v270 = vunpack.c.l.b16 %v199
  %v271 = vunpack.c.l.b16 %v200
  %v272 = vunpack.c.l.b16 %v201
  %v273 = vunpack.c.l.b16 %v202
  %v274 = vunpack.c.l.b16 %v203
  %v275 = vunpack.c.l.b16 %v204
  %v276 = vunpack.c.l.b16 %v205
  %v277 = vunpack.c.l.b16 %v206
  %v278 = vunpack.c.l.b16 %v207
  %v279 = vunpack.c.l.b16 %v208
  %v280 = vunpack.c.l.b16 %v209
  %v281 = vunpack.c.l.b16 %v210
  %v282 = vunpack.c.l.b16 %v211
  %v283 = vunpack.c.l.b16 %v212
  %v284 = vunpack.c.l.b16 %v213
  %v285 = vunpack.c.l.b16 %v214
  %v286 = vunpack.c.l.b16 %v215
  %v287 = vunpack.c.l.b16 %v216
  %v288 = vunpack.c.l.b16 %v217
  %v289 = vpack.c.b16 %v258, %v257
  %v290 = vpack.c.b16 %v260, %v259
  %v291 = vpack.c.b16 %v262, %v261
  %v292 = vpack.c.b16 %v264, %v263
  %v293 = vpack.c.b16 %v266, %v265
  %v294 = vpack.c.b16 %v268, %v267
  %v295 = vpack.c.b16 %v270, %v269
  %v296 = vpack.c.b16 %v272, %v271
  %v297 = vpack.c.b16 %v274, %v273
  %v298 = vpack.c.b16 %v276, %v275
  %v299 = vpack.c.b16 %v278, %v277
  %v300 = vpack.c.b16 %v280, %v279
  %v301 = vpack.c.b16 %v282, %v281
  %v302 = vpack.c.b16 %v284, %v283
  %v303 = vpack.c.b16 %v286, %v285
  %v304 = vpack.c.b16 %v288, %v287
  %321 = vmatprep.subr.bf16.mxu0 0
  %322 = vmatpush1.bf16.msra.mxu0 %v289
  %323 = vmatprep.subr.bf16.mxu0 0
  %324 = vmatpush1.bf16.msra.mxu0 %v290
  %325 = vmatprep.subr.bf16.mxu0 0
  %326 = vmatpush1.bf16.msra.mxu0 %v291
  %327 = vmatprep.subr.bf16.mxu0 0
  %328 = vmatpush1.bf16.msra.mxu0 %v292
  %329 = vmatprep.subr.bf16.mxu0 0
  %330 = vmatpush1.bf16.msra.mxu0 %v293
  %331 = vmatprep.subr.bf16.mxu0 0
  %332 = vmatpush1.bf16.msra.mxu0 %v294
  %333 = vmatprep.subr.bf16.mxu0 0
  %334 = vmatpush1.bf16.msra.mxu0 %v295
  %335 = vmatprep.subr.bf16.mxu0 0
  %336 = vmatpush1.bf16.msra.mxu0 %v296
  %337 = vmatprep.subr.bf16.mxu0 0
  %338 = vmatpush1.bf16.msra.mxu0 %v297
  %339 = vmatprep.subr.bf16.mxu0 0
  %340 = vmatpush1.bf16.msra.mxu0 %v298
  %341 = vmatprep.subr.bf16.mxu0 0
  %342 = vmatpush1.bf16.msra.mxu0 %v299
  %343 = vmatprep.subr.bf16.mxu0 0
  %344 = vmatpush1.bf16.msra.mxu0 %v300
  %345 = vmatprep.subr.bf16.mxu0 0
  %346 = vmatpush1.bf16.msra.mxu0 %v301
  %347 = vmatprep.subr.bf16.mxu0 0
  %348 = vmatpush1.bf16.msra.mxu0 %v302
  %349 = vmatprep.subr.bf16.mxu0 0
  %350 = vmatpush1.bf16.msra.mxu0 %v303
  %351 = vmatprep.subr.bf16.mxu0 0
  %352 = vmatpush1.bf16.msra.mxu0 %v304
  %353 = vmatprep.mubr.bf16.mxu0 %v185
  %354 = vmatmul.mubr.bf16.gmra.mrb[0].mxu0 %v184
  %v355 = vpop.f32.mrb[0].mxu0
  %v356 = vadd.f32 %v223, %v355
  %v357 = vpop.f32.mrb[0].mxu0
  %v358 = vpop.f32.mrb[0].mxu0
  %v359 = vpop.f32.mrb[0].mxu0
  %360 = vdwg.mxu0
  %vm361 = vcmp.gt.f32.partialorder %v356, 0.0
  %v362 = vmul.f32 %v356, 0.01
  %v363 = vsel %vm361, %v356, %v362
  %v364 = vpack.c.bf16 %v363, %v363
  %v365 = vld [vmem:[%s5] sm:$0xf]
  %v366 = vld [vmem:[%s5 + $0x4] sm:$0xf]
  %v367 = vld [vmem:[%s5 + $0x8] sm:$0xf]
  %v368 = vld [vmem:[%s5 + $0xc] sm:$0xf]
  %v369 = vld [vmem:[%s5 + $0x10] sm:$0xf]
  %v370 = vld [vmem:[%s5 + $0x14] sm:$0xf]
  %v371 = vld [vmem:[%s5 + $0x18] sm:$0xf]
  %v372 = vld [vmem:[%s5 + $0x1c] sm:$0xf]
  %v373 = vld [vmem:[%s5 + $0x20] sm:$0xf]
  %v374 = vld [vmem:[%s5 + $0x24] sm:$0xf]
  %v375 = vld [vmem:[%s5 + $0x28] sm:$0xf]
  %v376 = vld [vmem:[%s5 + $0x2c] sm:$0xf]
  %v377 = vld [vmem:[%s5 + $0x30] sm:$0xf]
  %v378 = vld [vmem:[%s5 + $0x34] sm:$0xf]
  %v379 = vld [vmem:[%s5 + $0x38] sm:$0xf]
  %v380 = vld [vmem:[%s5 + $0x3c] sm:$0xf]
  %v381 = vld [vmem:[%s6] sm:$0x1]
  %v383 = vlaneseq
  %v384 = vshrl.u32 %v383, 7
  %v385 = vsub.s32 0, %v384
  %v386 = vrot.slane %v381, %v385
  %v404 = vunpack.c.l.b16 %v365
  %v405 = vunpack.c.l.b16 %v366
  %v406 = vunpack.c.l.b16 %v367
  %v407 = vunpack.c.l.b16 %v368
  %v408 = vunpack.c.l.b16 %v369
  %v409 = vunpack.c.l.b16 %v370
  %v410 = vunpack.c.l.b16 %v371
  %v411 = vunpack.c.l.b16 %v372
  %v412 = vunpack.c.l.b16 %v373
  %v413 = vunpack.c.l.b16 %v374
  %v414 = vunpack.c.l.b16 %v375
  %v415 = vunpack.c.l.b16 %v376
  %v416 = vunpack.c.l.b16 %v377
  %v417 = vunpack.c.l.b16 %v378
  %v418 = vunpack.c.l.b16 %v379
  %v419 = vunpack.c.l.b16 %v380
  %v420 = vpack.c.b16 %v405, %v404
  %v421 = vpack.c.b16 %v407, %v406
  %v422 = vpack.c.b16 %v409, %v408
  %v423 = vpack.c.b16 %v411, %v410
  %v424 = vpack.c.b16 %v413, %v412
  %v425 = vpack.c.b16 %v415, %v414
  %v426 = vpack.c.b16 %v417, %v416
  %v427 = vpack.c.b16 %v419, %v418
  %436 = vmatprep.subr.bf16.mxu0 0
  %437 = vmatpush1.bf16.msra.mxu0 %v420
  %438 = vmatprep.subr.bf16.mxu0 0
  %439 = vmatpush1.bf16.msra.mxu0 %v421
  %440 = vmatprep.subr.bf16.mxu0 0
  %441 = vmatpush1.bf16.msra.mxu0 %v422
  %442 = vmatprep.subr.bf16.mxu0 0
  %443 = vmatpush1.bf16.msra.mxu0 %v423
  %444 = vmatprep.subr.bf16.mxu0 0
  %445 = vmatpush1.bf16.msra.mxu0 %v424
  %446 = vmatprep.subr.bf16.mxu0 0
  %447 = vmatpush1.bf16.msra.mxu0 %v425
  %448 = vmatprep.subr.bf16.mxu0 0
  %449 = vmatpush1.bf16.msra.mxu0 %v426
  %450 = vmatprep.subr.bf16.mxu0 0
  %451 = vmatpush1.bf16.msra.mxu0 %v427
  %452 = vmatprep.subr.bf16.mxu0 0
  %453 = vmatpush1.bf16.msra.mxu0 0
  %454 = vmatprep.subr.bf16.mxu0 0
  %455 = vmatpush1.bf16.msra.mxu0 0
  %456 = vmatprep.subr.bf16.mxu0 0
  %457 = vmatpush1.bf16.msra.mxu0 0
  %458 = vmatprep.subr.bf16.mxu0 0
  %459 = vmatpush1.bf16.msra.mxu0 0
  %460 = vmatprep.subr.bf16.mxu0 0
  %461 = vmatpush1.bf16.msra.mxu0 0
  %462 = vmatprep.subr.bf16.mxu0 0
  %463 = vmatpush1.bf16.msra.mxu0 0
  %464 = vmatprep.subr.bf16.mxu0 0
  %465 = vmatpush1.bf16.msra.mxu0 0
  %466 = vmatprep.subr.bf16.mxu0 0
  %467 = vmatpush1.bf16.msra.mxu0 0
  %468 = vmatprep.mubr.bf16.mxu0 0
  %469 = vmatmul.mubr.bf16.gmra.mrb[0].mxu0 %v364
  %v470 = vpop.f32.mrb[0].mxu0
  %v471 = vadd.f32 %v386, %v470
  %v472 = vpop.f32.mrb[0].mxu0
  %v473 = vpop.f32.mrb[0].mxu0
  %v474 = vpop.f32.mrb[0].mxu0
  %475 = vdwg.mxu0
  %v476 = vtanh.pop %v471
  %477 = vst [vmem:[%s7] sm:$0xff] %v476
  // Predicated region
  $region30: #{actor_forward.1} parent=0 // pred_check
    _
  $region31: #{actor_forward.1} parent=0 // pred_check_branch
    %479 = sbr.rel (0) target = $region33
  $region32: #{actor_forward.1} parent=0 // pred_region
    _
  $region33: #{actor_forward.1} parent=0 // pred_fallthru
    _
  // Predicated region
  $region34: #{actor_forward.1} parent=0 // pred_check
    _
  $region35: #{actor_forward.1} parent=0 // pred_check_branch
    %481 = sbr.rel (0) target = $region37
  $region36: #{actor_forward.1} parent=0 // pred_region
    _
  $region37: #{actor_forward.1} parent=0 // pred_fallthru
    _

</llo_original>
